<compile_context>
chip_gen: v7x
topology: tpu7x:2x2x1
jax: 0.10.0
libtpu: 0.0.40
codegen_flags: <defaults>
</compile_context>

<pallas_src>
import functools

import jax
import jax.numpy as jnp
from jax import lax
from jax.experimental import pallas as pl
from jax.experimental.pallas import tpu as pltpu

LANE = 128


def _round_up(x, m):
    return ((x + m - 1) // m) * m


def _bce_partial_kernel(p_ref, t_ref, out_ref, *, rows_per_core, acc_rows):
    """Accumulates per-core partial BCE sums onto a lane-dense (acc_rows,128) slab."""
    i = pl.program_id(1)                 # reduction axis (row-blocks within a core)
    block_rows = p_ref.shape[0]

    @pl.when(i == 0)
    def _():
        out_ref[...] = jnp.zeros_like(out_ref)

    p = p_ref[...].astype(jnp.float32)   # in-kernel upcast (bf16/int8/bool pass-through)
    t = t_ref[...].astype(jnp.float32)

    # Partial last block per core: sanitize out-of-range rows to p=t=1.0 BEFORE
    # the logs (contributes exactly 0 under the -100 clamp, never forms NaN).
    if rows_per_core % block_rows != 0:  # static; no cost for aligned cases
        row = i * block_rows + lax.broadcasted_iota(jnp.int32, p.shape, 0)
        valid = row < rows_per_core
        p = jnp.where(valid, p, 1.0)
        t = jnp.where(valid, t, 1.0)

    # PyTorch BCELoss clamps the log terms at -100.  (log(1-p) instead of
    # log1p(-p) matches PyTorch semantics.)
    log_p = jnp.maximum(jnp.log(p), -100.0)
    log_1mp = jnp.maximum(jnp.log(1.0 - p), -100.0)
    loss = -(t * log_p + (1.0 - t) * log_1mp)

    # VPU-only fold onto the lane-dense accumulator (acc_rows sublanes of ILP);
    # the single cross-lane reduce happens in the wrapper.
    out_ref[...] += jnp.sum(loss.reshape(-1, acc_rows, LANE), axis=0)


def bce_loss_2d(probs, targets):
    """Mean BCE over all elements of probs/targets (any matching total size)."""
    total = probs.size
    p = probs.reshape(-1)
    t = targets.reshape(-1)

    # Only unsupported widths get a wrapper cast; 1/2/4-byte dtypes stream
    # straight into the kernel and are upcast there (saves a full HBM copy).
    if p.dtype.itemsize not in (1, 2, 4):
        p = p.astype(jnp.float32)
    if t.dtype.itemsize not in (1, 2, 4):
        t = t.astype(jnp.float32)

    max_item = max(p.dtype.itemsize, t.dtype.itemsize)
    # ~8 MiB of double-buffered VMEM in flight regardless of dtype width.
    max_block_rows = 8192 if max_item <= 2 else 4096
    # Sublane packing alignment for the narrower stream (f32:8, bf16:16, i8/bool:32).
    sub_align = max(32 // p.dtype.itemsize, 32 // t.dtype.itemsize)

    rows128 = pl.cdiv(total, LANE)

    # Two-TensorCore split (v7x / megacore) only when each core gets at least
    # one full block, and never if it would force an extra full-array pad copy.
    if rows128 >= 2 * max_block_rows:
        nc = 1 if (total % LANE == 0 and rows128 % 2 == 1) else 2
    else:
        nc = 1

    if rows128 >= nc * max_block_rows:
        block_rows = max_block_rows                  # multiple of 32
        align_elems = nc * LANE                      # minimal reshape alignment
    else:
        # Small input: one block per core; padding a tiny array is free.
        block_rows = _round_up(rows128, sub_align)
        align_elems = block_rows * LANE

    padded_total = _round_up(total, align_elems)
    pad = padded_total - total
    if pad:
        # Pad value 1 on both streams contributes exactly 0 loss under the
        # -100 clamp, so no mask stream is needed for the element tail.
        p = jnp.pad(p, (0, pad), constant_values=1)
        t = jnp.pad(t, (0, pad), constant_values=1)

    rows = padded_total // LANE
    rows_per_core = rows // nc
    steps = pl.cdiv(rows_per_core, block_rows)
    acc_rows = 32 if block_rows % 32 == 0 else (16 if block_rows % 16 == 0 else 8)

    # Free (contiguous) reshapes to a lane-dense, per-core slab.
    p3 = p.reshape(nc, rows_per_core, LANE)
    t3 = t.reshape(nc, rows_per_core, LANE)

    kernel = functools.partial(
        _bce_partial_kernel, rows_per_core=rows_per_core, acc_rows=acc_rows
    )

    partials = pl.pallas_call(
        kernel,
        out_shape=jax.ShapeDtypeStruct((nc, acc_rows, LANE), jnp.float32),
        grid_spec=pltpu.PrefetchScalarGridSpec(
            num_scalar_prefetch=0,
            grid=(nc, steps),
            in_specs=[
                pl.BlockSpec((None, block_rows, LANE), lambda c, i: (c, i, 0)),
                pl.BlockSpec((None, block_rows, LANE), lambda c, i: (c, i, 0)),
            ],
            # Output block is constant across the reduction axis -> acts as the
            # per-core accumulator (no separate scratch needed).
            out_specs=pl.BlockSpec((None, acc_rows, LANE), lambda c, i: (c, 0, 0)),
        ),
        compiler_params=pltpu.CompilerParams(
            dimension_semantics=("parallel", "arbitrary"),
        ),
    )(p3, t3)

    # Tiny final reduce + mean scaling in the wrapper.
    return jnp.sum(partials) / total


if __name__ == "__main__":
    key = jax.random.PRNGKey(0)
    k1, k2 = jax.random.split(key)

    # NCHW, small shapes: batch=2, channels=4, spatial=16x16
    probs = jax.nn.sigmoid(jax.random.normal(k1, (2, 4, 16, 16), jnp.float32))
    targets = (jax.random.uniform(k2, (2, 4, 16, 16)) > 0.5).astype(jnp.float32)

    loss = bce_loss_2d(probs, targets)
    jax.block_until_ready(loss)

    # Pure-JAX reference (same clamp-at--100 semantics as PyTorch BCELoss).
    ref = jnp.mean(
        -(
            targets * jnp.maximum(jnp.log(probs), -100.0)
            + (1.0 - targets) * jnp.maximum(jnp.log(1.0 - probs), -100.0)
        )
    )
    assert jnp.allclose(loss, ref, rtol=1e-5, atol=1e-6), (loss, ref)

    print("KERNEL_OK")
</pallas_src>

<mosaic_0001>
module attributes {stable_mosaic.version = 11 : i64} {
  func.func @_bce_partial_kernel(%arg0: i32, %arg1: i32, %arg2: memref<1x16x128xf32, #tpu.memory_space<vmem>>, %arg3: memref<1x16x128xf32, #tpu.memory_space<vmem>>, %arg4: memref<1x16x128xf32, #tpu.memory_space<vmem>>) attributes {dimension_semantics = [#tpu.dimension_semantics<parallel>, #tpu.dimension_semantics<arbitrary>], iteration_bounds = array<i64: 1, 1>, scalar_prefetch = 0 : i64, scratch_operands = 0 : i64, tpu.core_type = #tpu.core_type<tc>, window_params = [{transform_indices = @transform_0, window_bounds = array<i64: 1, 16, 128>}, {transform_indices = @transform_1, window_bounds = array<i64: 1, 16, 128>}, {transform_indices = @transform_2, window_bounds = array<i64: 1, 16, 128>}]} {
    %c0_i32 = arith.constant 0 : i32
    %0 = arith.cmpi eq, %arg1, %c0_i32 : i32
    %1 = arith.extui %0 : i1 to i32
    %c0_i32_0 = arith.constant 0 : i32
    %2 = arith.cmpi ne, %1, %c0_i32_0 : i32
    scf.if %2 {
      %cst_17 = arith.constant 0.000000e+00 : f32
      %30 = vector.broadcast %cst_17 : f32 to vector<16x128xf32>
      %c0_18 = arith.constant 0 : index
      %c0_19 = arith.constant 0 : index
      %c0_20 = arith.constant 0 : index
      %31 = vector.load %arg4[%c0_18, %c0_19, %c0_20] : memref<1x16x128xf32, #tpu.memory_space<vmem>>, vector<1x16x128xf32>
      %32 = vector.shape_cast %31 : vector<1x16x128xf32> to vector<16x128xf32>
      %33 = vector.shape_cast %30 : vector<16x128xf32> to vector<1x16x128xf32>
      tpu.vector_store %arg4[%c0_18, %c0_19, %c0_20], %33 {strides = array<i32>} : memref<1x16x128xf32, #tpu.memory_space<vmem>>, vector<1x16x128xf32>,
    } else {
    }
    %c0 = arith.constant 0 : index
    %c0_1 = arith.constant 0 : index
    %c0_2 = arith.constant 0 : index
    %3 = vector.load %arg2[%c0, %c0_1, %c0_2] : memref<1x16x128xf32, #tpu.memory_space<vmem>>, vector<1x16x128xf32>
    %4 = vector.shape_cast %3 : vector<1x16x128xf32> to vector<16x128xf32>
    %c0_3 = arith.constant 0 : index
    %c0_4 = arith.constant 0 : index
    %c0_5 = arith.constant 0 : index
    %5 = vector.load %arg3[%c0_3, %c0_4, %c0_5] : memref<1x16x128xf32, #tpu.memory_space<vmem>>, vector<1x16x128xf32>
    %6 = vector.shape_cast %5 : vector<1x16x128xf32> to vector<16x128xf32>
    %7 = math.log %4 : vector<16x128xf32>
    %cst = arith.constant -1.000000e+02 : f32
    %8 = vector.broadcast %cst : f32 to vector<16x128xf32>
    %9 = arith.maximumf %7, %8 : vector<16x128xf32>
    %cst_6 = arith.constant 1.000000e+00 : f32
    %10 = vector.broadcast %cst_6 : f32 to vector<16x128xf32>
    %11 = arith.subf %10, %4 : vector<16x128xf32>
    %12 = math.log %11 : vector<16x128xf32>
    %cst_7 = arith.constant -1.000000e+02 : f32
    %13 = vector.broadcast %cst_7 : f32 to vector<16x128xf32>
    %14 = arith.maximumf %12, %13 : vector<16x128xf32>
    %15 = arith.mulf %6, %9 : vector<16x128xf32>
    %cst_8 = arith.constant 1.000000e+00 : f32
    %16 = vector.broadcast %cst_8 : f32 to vector<16x128xf32>
    %17 = arith.subf %16, %6 : vector<16x128xf32>
    %18 = arith.mulf %17, %14 : vector<16x128xf32>
    %19 = arith.addf %15, %18 : vector<16x128xf32>
    %cst_9 = arith.constant 0.000000e+00 : f32
    %20 = vector.broadcast %cst_9 : f32 to vector<16x128xf32>
    %21 = arith.subf %20, %19 : vector<16x128xf32>
    %c0_10 = arith.constant 0 : index
    %c0_11 = arith.constant 0 : index
    %c0_12 = arith.constant 0 : index
    %22 = vector.load %arg4[%c0_10, %c0_11, %c0_12] : memref<1x16x128xf32, #tpu.memory_space<vmem>>, vector<1x16x128xf32>
    %23 = vector.shape_cast %22 : vector<1x16x128xf32> to vector<16x128xf32>
    %24 = vector.shape_cast %21 : vector<16x128xf32> to vector<1x16x128xf32>
    %cst_13 = arith.constant dense<0.000000e+00> : vector<16x128xf32>
    %25 = vector.multi_reduction <add>, %24, %cst_13 [0] : vector<1x16x128xf32> to vector<16x128xf32>
    %26 = arith.addf %23, %25 : vector<16x128xf32>
    %c0_14 = arith.constant 0 : index
    %c0_15 = arith.constant 0 : index
    %c0_16 = arith.constant 0 : index
    %27 = vector.load %arg4[%c0_14, %c0_15, %c0_16] : memref<1x16x128xf32, #tpu.memory_space<vmem>>, vector<1x16x128xf32>
    %28 = vector.shape_cast %27 : vector<1x16x128xf32> to vector<16x128xf32>
    %29 = vector.shape_cast %26 : vector<16x128xf32> to vector<1x16x128xf32>
    tpu.vector_store %arg4[%c0_14, %c0_15, %c0_16], %29 {strides = array<i32>} : memref<1x16x128xf32, #tpu.memory_space<vmem>>, vector<1x16x128xf32>,
    return
  }
  func.func @transform_0(%arg0: i32, %arg1: i32) -> (i32, i32, i32) {
    %c0_i32 = arith.constant 0 : i32
    %c0_i32_0 = arith.constant 0 : i32
    return %arg0, %arg1, %c0_i32 : i32, i32, i32
  }
  func.func @transform_1(%arg0: i32, %arg1: i32) -> (i32, i32, i32) {
    %c0_i32 = arith.constant 0 : i32
    %c0_i32_0 = arith.constant 0 : i32
    return %arg0, %arg1, %c0_i32 : i32, i32, i32
  }
  func.func @transform_2(%arg0: i32, %arg1: i32) -> (i32, i32, i32) {
    %c0_i32 = arith.constant 0 : i32
    %c0_i32_0 = arith.constant 0 : i32
    %c0_i32_1 = arith.constant 0 : i32
    return %arg0, %c0_i32, %c0_i32_0 : i32, i32, i32
  }
}

</mosaic_0001>

<llo_original>
// kernel: tpu_custom_call.1
$region0: #{tpu_custom_call.1}
  #allocation0 [shape = 'u32[]', space=smem, size = 0x4, offset = 0x4, fixed_abs, tag = 'smem constant byte address 0x4 - core index']
  #allocation1 [shape = 'u32[144,128]{1,0:T(1,128)}', space=vmem, size = 0x12000, scoped, tag = 'internal scratch']
  %s0 = inlined_call_operand.hbm [shape: f32[1,16,128], index: 0, kind: input, shape index: {}]
  %s1 = inlined_call_operand.hbm [shape: f32[1,16,128], index: 1, kind: input, shape index: {}]
  %s2 = inlined_call_operand.hbm [shape: f32[1,16,128], index: 2, kind: output, shape index: {}]
  %s3 = sld [smem:[#allocation0]]
  $region30: #{tpu_custom_call.1} parent=0
    _
  %s5 = ssub.s32 1, %s3
  %s6 = scalar_select 0, %s5, %s3
  $region1: #{tpu_custom_call.1} parent=0
    #allocation2 [shape = 'u8[8192]{0}', space=vmem, size = 0x2000, scoped, tag = 'input window, operand 0, single buffered']
    #allocation3 [shape = 's32[1]{0}', space=sflag, size = 0x4, scoped, tag = 'scoped memory for tpu_custom_call.1']
    #allocation4 [shape = 's32[1]{0}', space=sflag, size = 0x4, scoped, tag = 'scoped memory for tpu_custom_call.1']
    #allocation5 [shape = 'u8[8192]{0}', space=vmem, size = 0x2000, scoped, tag = 'input window, operand 1, single buffered']
    #allocation6 [shape = 's32[1]{0}', space=sflag, size = 0x4, scoped, tag = 'scoped memory for tpu_custom_call.1']
    #allocation7 [shape = 'u8[8192]{0}', space=vmem, size = 0x2000, scoped, tag = 'output window, operand 0, single buffered']
    %7 = vsyncpa [#allocation3], 0
    %8 = vsyncpa [#allocation6], 0
    %9 = vsyncpa [#allocation4], 0
    // Predicated region
    $region2: #{tpu_custom_call.1} parent=1 // pred_check
      _
    $region3: #{tpu_custom_call.1} parent=1 // pred_check_branch
      %11 = sbr.rel (0) target = $region5
    $region4: #{tpu_custom_call.1} parent=1 // pred_region
      %s13 = ssub.s32 256, 256
      %14 = vsyncadd [#allocation3], %s13
      %s15 = sshll.u32 [#allocation2], 4
      %s16 = int_to_ptr.vmem [resolvable:$true] %s15
      %21 = dma.hbm_to_vmem [thread:$0]  %s0, 256, %s16, [#allocation3], 128, 128, 8
    $region5: #{tpu_custom_call.1} parent=1 // pred_fallthru
      _
    // Predicated region
    $region6: #{tpu_custom_call.1} parent=1 // pred_check
      _
    $region7: #{tpu_custom_call.1} parent=1 // pred_check_branch
      %23 = sbr.rel (0) target = $region9
    $region8: #{tpu_custom_call.1} parent=1 // pred_region
      %s25 = ssub.s32 256, 256
      %26 = vsyncadd [#allocation6], %s25
      %s27 = sshll.u32 [#allocation5], 4
      %s28 = int_to_ptr.vmem [resolvable:$true] %s27
      %33 = dma.hbm_to_vmem [thread:$0]  %s1, 256, %s28, [#allocation6], 128, 128, 8
    $region9: #{tpu_custom_call.1} parent=1 // pred_fallthru
      _
    // Predicated region
    $region10: #{tpu_custom_call.1} parent=1 // pred_check
      _
    $region11: #{tpu_custom_call.1} parent=1 // pred_check_branch
      %35 = sbr.rel (0) target = $region13
    $region12: #{tpu_custom_call.1} parent=1 // pred_region
      %36 = dma.done [#allocation3], 256
    $region13: #{tpu_custom_call.1} parent=1 // pred_fallthru
      _
    // Predicated region
    $region14: #{tpu_custom_call.1} parent=1 // pred_check
      _
    $region15: #{tpu_custom_call.1} parent=1 // pred_check_branch
      %38 = sbr.rel (0) target = $region17
    $region16: #{tpu_custom_call.1} parent=1 // pred_region
      %39 = dma.done [#allocation6], 256
    $region17: #{tpu_custom_call.1} parent=1 // pred_fallthru
      _
    %p40 = scmp.eq.s32.totalorder 0, 0
    // Predicated region
    $region18: #{tpu_custom_call.1} parent=1 // pred_check
      %p41 = pneg %p40
    $region19: #{tpu_custom_call.1} parent=1 // pred_check_branch
      %43 = sbr.rel (%p41) target = $region21
    $region20: #{tpu_custom_call.1} parent=1 // pred_region
      %44 = vst [vmem:[#allocation7] sm:$0xff] 0.0
      %45 = vst [vmem:[#allocation7 + $0x8] sm:$0xff] 0.0
    $region21: #{tpu_custom_call.1} parent=1 // pred_fallthru
      _
    %v46 = vld [vmem:[#allocation2] sm:$0xff]
    %v47 = vld [vmem:[#allocation2 + $0x8] sm:$0xff]
    %v48 = vld [vmem:[#allocation5] sm:$0xff]
    %v49 = vld [vmem:[#allocation5 + $0x8] sm:$0xff]
    %v50 = vlog2.pop %v46
    %v51 = vmul.f32 %v50, 0.6931472
    %v52 = vlog2.pop %v47
    %v53 = vmul.f32 %v52, 0.6931472
    %v54 = vmax.f32 %v51, -100.0
    %v55 = vmax.f32 %v53, -100.0
    %v56 = vsub.f32 1.0, %v46
    %v57 = vsub.f32 1.0, %v47
    %v58 = vlog2.pop %v56
    %v59 = vmul.f32 %v58, 0.6931472
    %v60 = vlog2.pop %v57
    %v61 = vmul.f32 %v60, 0.6931472
    %v62 = vmax.f32 %v59, -100.0
    %v63 = vmax.f32 %v61, -100.0
    %v64 = vmul.f32 %v48, %v54
    %v65 = vmul.f32 %v49, %v55
    %v66 = vsub.f32 1.0, %v48
    %v67 = vsub.f32 1.0, %v49
    %v68 = vmul.f32 %v66, %v62
    %v69 = vmul.f32 %v67, %v63
    %v70 = vadd.f32 %v64, %v68
    %v71 = vadd.f32 %v65, %v69
    %v72 = vsub.f32 0.0, %v70
    %v73 = vsub.f32 0.0, %v71
    %v74 = vld [vmem:[#allocation7] sm:$0xff]
    %v75 = vld [vmem:[#allocation7 + $0x8] sm:$0xff]
    %v76 = vadd.f32 %v72, 0.0
    %v77 = vadd.f32 %v73, 0.0
    %v78 = vadd.f32 %v74, %v76
    %v79 = vadd.f32 %v75, %v77
    %80 = vst [vmem:[#allocation7] sm:$0xff] %v78
    %81 = vst [vmem:[#allocation7 + $0x8] sm:$0xff] %v79
    // Predicated region
    $region22: #{tpu_custom_call.1} parent=1 // pred_check
      _
    $region23: #{tpu_custom_call.1} parent=1 // pred_check_branch
      %83 = sbr.rel (0) target = $region25
    $region24: #{tpu_custom_call.1} parent=1 // pred_region
      %s85 = ssub.s32 256, 256
      %86 = vsyncadd [#allocation4], %s85
      %s87 = sshll.u32 [#allocation7], 4
      %s88 = int_to_ptr.vmem [resolvable:$true] %s87
      %93 = dma.vmem_to_hbm [thread:$0]  %s88, 256, %s2, [#allocation4], 128, 128, 8
    $region25: #{tpu_custom_call.1} parent=1 // pred_fallthru
      _
    // Predicated region
    $region26: #{tpu_custom_call.1} parent=1 // pred_check
      _
    $region27: #{tpu_custom_call.1} parent=1 // pred_check_branch
      %95 = sbr.rel (0) target = $region29
    $region28: #{tpu_custom_call.1} parent=1 // pred_region
      %96 = dma.done [#allocation4], 256
    $region29: #{tpu_custom_call.1} parent=1 // pred_fallthru
      _
    %97 = vsyncpa [#allocation3], 1
    %98 = vsyncpa [#allocation6], 1
    %99 = vsyncpa [#allocation4], 1

</llo_original>
